<compile_context>
chip_gen: v7x
topology: tpu7x:2x2x1
jax: 0.10.0
libtpu: 0.0.40
codegen_flags: <defaults>
</compile_context>

<pallas_src>
import functools

import jax
import jax.numpy as jnp
import numpy as np
from jax.experimental import pallas as pl
from jax.experimental.pallas import tpu as pltpu

LN_EPS = 1e-5  # PyTorch nn.LayerNorm default
LANE = 128


def _round_up(x, m):
    return (x + m - 1) // m * m


def state_encoder_kernel(x_ref, w1_ref, b1_ref, w2_ref, b2_ref,
                         w3_ref, b3_ref, g_ref, beta_ref, o_ref,
                         *, dim_latent):
    # In-kernel bf16 cast of the input tile (saves a separate wrapper-side HBM pass).
    x = x_ref[...].astype(jnp.bfloat16)                       # (TILE_B, dim_state)
    w1 = w1_ref[...]
    w2 = w2_ref[...]
    w3 = w3_ref[...]                                          # bf16, lane-dense (*, D_PAD)
    b1 = b1_ref[...]
    b2 = b2_ref[...]
    b3 = b3_ref[...]                                          # (1, D_PAD) f32
    gamma = g_ref[...]
    beta = beta_ref[...]                                      # (1, D_PAD) f32

    # Linear 1 + fused ReLU / bf16 downcast
    h = jnp.dot(x, w1, preferred_element_type=jnp.float32) + b1
    h = jnp.maximum(h, 0.0).astype(jnp.bfloat16)
    # Linear 2 + fused ReLU / bf16 downcast
    h = jnp.dot(h, w2, preferred_element_type=jnp.float32) + b2
    h = jnp.maximum(h, 0.0).astype(jnp.bfloat16)
    # Linear 3 (f32 result; pad lanes are exactly 0 because w3/b3 pad columns are 0)
    h = jnp.dot(h, w3, preferred_element_type=jnp.float32) + b3

    # LayerNorm over the real dim_latent lanes.  Pad lanes of h are exactly 0, so the
    # full-lane sums already equal the sums over the valid lanes -> no mask pass.
    inv_n = jnp.float32(1.0 / dim_latent)
    mean = jnp.sum(h, axis=-1, keepdims=True) * inv_n
    ex2 = jnp.sum(h * h, axis=-1, keepdims=True) * inv_n
    var = ex2 - mean * mean
    inv_std = jax.lax.rsqrt(var + LN_EPS)

    # Pad lanes: gamma = beta = 0 -> y = 0 -> tanh(0) = 0 (exactly-zero pad lanes).
    y = (h - mean) * inv_std * gamma + beta
    # tanh in the output dtype (bf16 EUP on v6e/v7x; compiler upcasts on v5e).
    o_ref[...] = jnp.tanh(y.astype(o_ref.dtype))


def state_encoder_forward(state, params, *, dim_latent, tile_b=2048,
                          out_dtype=jnp.bfloat16, trim=False):
    """state: (B, dim_state) float32.

    Returns (ceil(B/tile)*tile, 128) `out_dtype` with exactly-zero pad rows/lanes
    (trim=False, default — lets consumers ignore/fuse the slice), or the compact
    (B, dim_latent) view when trim=True.
    """
    B, dim_state = state.shape
    d_pad = params["w3"].shape[1]

    # Tile-size selection:
    #   * multiple of 8 (the (8,128) BlockSpec rule),
    #   * large tiles to amortize the ~0.35 us per-grid-step overhead,
    #   * >=2 grid steps when B allows it so "parallel" can use both v7x TensorCores.
    tile_b = _round_up(max(8, int(tile_b)), 8)
    tile_b = min(tile_b, _round_up(B, 8))
    tile_b = min(tile_b, max(8, _round_up(pl.cdiv(B, 2), 8)))
    b_pad = _round_up(B, tile_b)
    if b_pad != B:
        state = jnp.pad(state, ((0, b_pad - B), (0, 0)))
    nb = b_pad // tile_b

    out_itemsize = jnp.dtype(out_dtype).itemsize
    param_bytes = sum(int(np.prod(p.shape)) * jnp.dtype(p.dtype).itemsize
                      for p in params.values())

    # Per-step VMEM footprint estimate (double-buffered tiles + resident params +
    # f32 temporaries headroom); only matters on v5e's 16 MiB scoped default.
    footprint = (2 * tile_b * dim_state * 4
                 + 2 * tile_b * d_pad * out_itemsize
                 + param_bytes
                 + 6 * tile_b * d_pad * 4)
    vmem_limit = int(min(60 << 20, max(2 * footprint, 32 << 20)))

    flops = 2 * b_pad * d_pad * (dim_state + 2 * d_pad)
    transcendentals = b_pad * d_pad + b_pad                   # tanh + rsqrt
    bytes_accessed = (b_pad * dim_state * 4                   # f32 input
                      + b_pad * d_pad * out_itemsize          # output slab
                      + param_bytes)

    batch_spec = lambda d: pl.BlockSpec((tile_b, d), lambda i: (i, 0))
    resident = lambda shape: pl.BlockSpec(shape, lambda i: (0, 0))  # fetched once

    out = pl.pallas_call(
        functools.partial(state_encoder_kernel, dim_latent=dim_latent),
        out_shape=jax.ShapeDtypeStruct((b_pad, d_pad), out_dtype),
        grid=(nb,),
        in_specs=[
            batch_spec(dim_state),
            resident(params["w1"].shape), resident(params["b1"].shape),
            resident(params["w2"].shape), resident(params["b2"].shape),
            resident(params["w3"].shape), resident(params["b3"].shape),
            resident(params["ln_gamma"].shape), resident(params["ln_beta"].shape),
        ],
        out_specs=batch_spec(d_pad),
        compiler_params=pltpu.CompilerParams(
            dimension_semantics=("parallel",),   # 2-TC sharding on v7x; no-op on v5e/v6e
            vmem_limit_bytes=vmem_limit,
        ),
        cost_estimate=pl.CostEstimate(flops=flops, transcendentals=transcendentals,
                                      bytes_accessed=bytes_accessed),
    )(state, params["w1"], params["b1"], params["w2"], params["b2"],
      params["w3"], params["b3"], params["ln_gamma"], params["ln_beta"])

    if trim:
        return out[:B, :dim_latent]
    return out


def xavier_uniform(key, fan_in, fan_out):
    # gain=1, matches torch.nn.init.xavier_uniform_
    limit = float(np.sqrt(6.0 / (fan_in + fan_out)))
    return jax.random.uniform(key, (fan_in, fan_out), jnp.float32, -limit, limit)


def init_params(key, dim_state, dim_latent):
    """weights_init_: xavier_uniform weights, zero biases; LayerNorm default (1, 0).
    Weights/biases are zero-padded along the latent dim to a lane-dense width (128) and
    matmul weights are stored in bf16 (MXU-native); biases/LN params stay f32."""
    d_pad = _round_up(dim_latent, LANE)
    k1, k2, k3 = jax.random.split(key, 3)

    def pad_to(w, rows, cols):
        return jnp.pad(w, ((0, rows - w.shape[0]), (0, cols - w.shape[1])))

    w1 = pad_to(xavier_uniform(k1, dim_state, dim_latent), dim_state, d_pad)
    w2 = pad_to(xavier_uniform(k2, dim_latent, dim_latent), d_pad, d_pad)
    w3 = pad_to(xavier_uniform(k3, dim_latent, dim_latent), d_pad, d_pad)

    zeros = jnp.zeros((1, d_pad), jnp.float32)
    gamma = jnp.where(jnp.arange(d_pad) < dim_latent, 1.0, 0.0).astype(jnp.float32)[None, :]
    return {
        "w1": w1.astype(jnp.bfloat16), "b1": zeros,
        "w2": w2.astype(jnp.bfloat16), "b2": zeros,
        "w3": w3.astype(jnp.bfloat16), "b3": zeros,
        "ln_gamma": gamma, "ln_beta": zeros,
    }


def reference_forward(state, params, dim_latent):
    """Pure-JAX reference with the same bf16-matmul / f32-elementwise semantics."""
    x = state.astype(jnp.bfloat16)
    h = jnp.dot(x, params["w1"], preferred_element_type=jnp.float32) + params["b1"]
    h = jnp.maximum(h, 0.0)
    h = jnp.dot(h.astype(jnp.bfloat16), params["w2"], preferred_element_type=jnp.float32) + params["b2"]
    h = jnp.maximum(h, 0.0)
    h = jnp.dot(h.astype(jnp.bfloat16), params["w3"], preferred_element_type=jnp.float32) + params["b3"]
    h = h[:, :dim_latent]
    mu = jnp.mean(h, axis=-1, keepdims=True)
    var = jnp.mean((h - mu) ** 2, axis=-1, keepdims=True)
    g = params["ln_gamma"][:, :dim_latent]
    b = params["ln_beta"][:, :dim_latent]
    return jnp.tanh((h - mu) * jax.lax.rsqrt(var + LN_EPS) * g + b)


if __name__ == "__main__":
    key = jax.random.PRNGKey(0)
    k_state, k_params = jax.random.split(key)

    # Small demo shapes (production: batch in the thousands, default tile_b=2048).
    batch = 64
    dim_state = 24
    dim_latent = 32

    state = jax.random.normal(k_state, (batch, dim_state), jnp.float32)
    params = init_params(k_params, dim_state, dim_latent)

    # Default tile_b gets clamped to 32 here -> a 2-step "parallel" batch grid.
    out = state_encoder_forward(state, params, dim_latent=dim_latent)
    out = jax.block_until_ready(out)

    out_np = np.asarray(out, dtype=np.float32)
    assert out_np.shape == (batch, 128)                      # padded, lane-dense slab
    # Pad lanes are exactly zero (gamma/beta pad = 0), so consumers may ignore them.
    np.testing.assert_allclose(out_np[:, dim_latent:], 0.0, atol=0.0)

    ref = np.asarray(reference_forward(state, params, dim_latent))
    # Tolerance covers the bf16 output quantization and the E[x^2]-mean^2 variance form.
    np.testing.assert_allclose(out_np[:, :dim_latent], ref, atol=2e-2, rtol=2e-2)

    # TODO(synk): `detach=True` (autograd stop-gradient) and copy_conv_weights_from are
    # host-side / training-graph concerns with no kernel equivalent.
    print("KERNEL_OK")
</pallas_src>

<mosaic_0001>
module attributes {stable_mosaic.version = 11 : i64} {
  func.func @state_encoder_kernel(%arg0: i32, %arg1: memref<32x24xf32, #tpu.memory_space<vmem>>, %arg2: memref<24x128xbf16, #tpu.memory_space<vmem>>, %arg3: memref<1x128xf32, #tpu.memory_space<vmem>>, %arg4: memref<128x128xbf16, #tpu.memory_space<vmem>>, %arg5: memref<1x128xf32, #tpu.memory_space<vmem>>, %arg6: memref<128x128xbf16, #tpu.memory_space<vmem>>, %arg7: memref<1x128xf32, #tpu.memory_space<vmem>>, %arg8: memref<1x128xf32, #tpu.memory_space<vmem>>, %arg9: memref<1x128xf32, #tpu.memory_space<vmem>>, %arg10: memref<32x128xbf16, #tpu.memory_space<vmem>>) attributes {dimension_semantics = [#tpu.dimension_semantics<parallel>], iteration_bounds = array<i64: 2>, scalar_prefetch = 0 : i64, scratch_operands = 0 : i64, tpu.core_type = #tpu.core_type<tc>, window_params = [{transform_indices = @transform_0, window_bounds = array<i64: 32, 24>}, {pipeline_mode = #tpu.pipeline_mode<synchronous>, transform_indices = @transform_1, window_bounds = array<i64: 24, 128>}, {pipeline_mode = #tpu.pipeline_mode<synchronous>, transform_indices = @transform_2, window_bounds = array<i64: 1, 128>}, {pipeline_mode = #tpu.pipeline_mode<synchronous>, transform_indices = @transform_3, window_bounds = array<i64: 128, 128>}, {pipeline_mode = #tpu.pipeline_mode<synchronous>, transform_indices = @transform_4, window_bounds = array<i64: 1, 128>}, {pipeline_mode = #tpu.pipeline_mode<synchronous>, transform_indices = @transform_5, window_bounds = array<i64: 128, 128>}, {pipeline_mode = #tpu.pipeline_mode<synchronous>, transform_indices = @transform_6, window_bounds = array<i64: 1, 128>}, {pipeline_mode = #tpu.pipeline_mode<synchronous>, transform_indices = @transform_7, window_bounds = array<i64: 1, 128>}, {pipeline_mode = #tpu.pipeline_mode<synchronous>, transform_indices = @transform_8, window_bounds = array<i64: 1, 128>}, {transform_indices = @transform_9, window_bounds = array<i64: 32, 128>}]} {
    %c0 = arith.constant 0 : index
    %c0_0 = arith.constant 0 : index
    %0 = vector.load %arg1[%c0, %c0_0] : memref<32x24xf32, #tpu.memory_space<vmem>>, vector<32x24xf32>
    %1 = arith.truncf %0 : vector<32x24xf32> to vector<32x24xbf16>
    %c0_1 = arith.constant 0 : index
    %c0_2 = arith.constant 0 : index
    %2 = vector.load %arg2[%c0_1, %c0_2] : memref<24x128xbf16, #tpu.memory_space<vmem>>, vector<24x128xbf16>
    %c0_3 = arith.constant 0 : index
    %c0_4 = arith.constant 0 : index
    %3 = vector.load %arg4[%c0_3, %c0_4] : memref<128x128xbf16, #tpu.memory_space<vmem>>, vector<128x128xbf16>
    %c0_5 = arith.constant 0 : index
    %c0_6 = arith.constant 0 : index
    %4 = vector.load %arg6[%c0_5, %c0_6] : memref<128x128xbf16, #tpu.memory_space<vmem>>, vector<128x128xbf16>
    %c0_7 = arith.constant 0 : index
    %c0_8 = arith.constant 0 : index
    %5 = vector.load %arg3[%c0_7, %c0_8] : memref<1x128xf32, #tpu.memory_space<vmem>>, vector<1x128xf32>
    %c0_9 = arith.constant 0 : index
    %c0_10 = arith.constant 0 : index
    %6 = vector.load %arg5[%c0_9, %c0_10] : memref<1x128xf32, #tpu.memory_space<vmem>>, vector<1x128xf32>
    %c0_11 = arith.constant 0 : index
    %c0_12 = arith.constant 0 : index
    %7 = vector.load %arg7[%c0_11, %c0_12] : memref<1x128xf32, #tpu.memory_space<vmem>>, vector<1x128xf32>
    %c0_13 = arith.constant 0 : index
    %c0_14 = arith.constant 0 : index
    %8 = vector.load %arg8[%c0_13, %c0_14] : memref<1x128xf32, #tpu.memory_space<vmem>>, vector<1x128xf32>
    %c0_15 = arith.constant 0 : index
    %c0_16 = arith.constant 0 : index
    %9 = vector.load %arg9[%c0_15, %c0_16] : memref<1x128xf32, #tpu.memory_space<vmem>>, vector<1x128xf32>
    %cst = arith.constant dense<0.000000e+00> : vector<32x128xf32>
    %10 = tpu.matmul %1, %2, %cst {dimension_numbers = #tpu.dot_dimension_numbers<[1], [0], [0], [1], [0, 0, 1, 1], [], []>} : vector<32x24xbf16>, vector<24x128xbf16>, vector<32x128xf32> -> vector<32x128xf32>
    %11 = vector.broadcast %5 : vector<1x128xf32> to vector<32x128xf32>
    %12 = arith.addf %10, %11 : vector<32x128xf32>
    %cst_17 = arith.constant 0.000000e+00 : f32
    %13 = vector.broadcast %cst_17 : f32 to vector<32x128xf32>
    %14 = arith.maximumf %12, %13 : vector<32x128xf32>
    %15 = arith.truncf %14 : vector<32x128xf32> to vector<32x128xbf16>
    %cst_18 = arith.constant dense<0.000000e+00> : vector<32x128xf32>
    %16 = tpu.matmul %15, %3, %cst_18 {dimension_numbers = #tpu.dot_dimension_numbers<[1], [0], [0], [1], [0, 0, 1, 1], [], []>} : vector<32x128xbf16>, vector<128x128xbf16>, vector<32x128xf32> -> vector<32x128xf32>
    %17 = vector.broadcast %6 : vector<1x128xf32> to vector<32x128xf32>
    %18 = arith.addf %16, %17 : vector<32x128xf32>
    %cst_19 = arith.constant 0.000000e+00 : f32
    %19 = vector.broadcast %cst_19 : f32 to vector<32x128xf32>
    %20 = arith.maximumf %18, %19 : vector<32x128xf32>
    %21 = arith.truncf %20 : vector<32x128xf32> to vector<32x128xbf16>
    %cst_20 = arith.constant dense<0.000000e+00> : vector<32x128xf32>
    %22 = tpu.matmul %21, %4, %cst_20 {dimension_numbers = #tpu.dot_dimension_numbers<[1], [0], [0], [1], [0, 0, 1, 1], [], []>} : vector<32x128xbf16>, vector<128x128xbf16>, vector<32x128xf32> -> vector<32x128xf32>
    %23 = vector.broadcast %7 : vector<1x128xf32> to vector<32x128xf32>
    %24 = arith.addf %22, %23 : vector<32x128xf32>
    %cst_21 = arith.constant dense<0.000000e+00> : vector<32xf32>
    %25 = vector.multi_reduction <add>, %24, %cst_21 [1] : vector<32x128xf32> to vector<32xf32>
    %26 = vector.shape_cast %25 : vector<32xf32> to vector<32x1xf32>
    %cst_22 = arith.constant 3.125000e-02 : f32
    %27 = vector.broadcast %cst_22 : f32 to vector<32x1xf32>
    %28 = arith.mulf %26, %27 : vector<32x1xf32>
    %29 = arith.mulf %24, %24 : vector<32x128xf32>
    %cst_23 = arith.constant dense<0.000000e+00> : vector<32xf32>
    %30 = vector.multi_reduction <add>, %29, %cst_23 [1] : vector<32x128xf32> to vector<32xf32>
    %31 = vector.shape_cast %30 : vector<32xf32> to vector<32x1xf32>
    %cst_24 = arith.constant 3.125000e-02 : f32
    %32 = vector.broadcast %cst_24 : f32 to vector<32x1xf32>
    %33 = arith.mulf %31, %32 : vector<32x1xf32>
    %34 = arith.mulf %28, %28 : vector<32x1xf32>
    %35 = arith.subf %33, %34 : vector<32x1xf32>
    %cst_25 = arith.constant 9.99999974E-6 : f32
    %36 = vector.broadcast %cst_25 : f32 to vector<32x1xf32>
    %37 = arith.addf %35, %36 : vector<32x1xf32>
    %38 = math.rsqrt %37 : vector<32x1xf32>
    %39 = vector.broadcast %28 : vector<32x1xf32> to vector<32x128xf32>
    %40 = arith.subf %24, %39 : vector<32x128xf32>
    %41 = vector.broadcast %38 : vector<32x1xf32> to vector<32x128xf32>
    %42 = arith.mulf %40, %41 : vector<32x128xf32>
    %43 = vector.broadcast %8 : vector<1x128xf32> to vector<32x128xf32>
    %44 = arith.mulf %42, %43 : vector<32x128xf32>
    %45 = vector.broadcast %9 : vector<1x128xf32> to vector<32x128xf32>
    %46 = arith.addf %44, %45 : vector<32x128xf32>
    %47 = arith.truncf %46 : vector<32x128xf32> to vector<32x128xbf16>
    %48 = math.tanh %47 : vector<32x128xbf16>
    %c0_26 = arith.constant 0 : index
    %c0_27 = arith.constant 0 : index
    %49 = vector.load %arg10[%c0_26, %c0_27] : memref<32x128xbf16, #tpu.memory_space<vmem>>, vector<32x128xbf16>
    tpu.vector_store %arg10[%c0_26, %c0_27], %48 {strides = array<i32>} : memref<32x128xbf16, #tpu.memory_space<vmem>>, vector<32x128xbf16>,
    return
  }
  func.func @transform_0(%arg0: i32) -> (i32, i32) {
    %c0_i32 = arith.constant 0 : i32
    %c0_i32_0 = arith.constant 0 : i32
    return %arg0, %c0_i32 : i32, i32
  }
  func.func @transform_1(%arg0: i32) -> (i32, i32) {
    %c0_i32 = arith.constant 0 : i32
    %c0_i32_0 = arith.constant 0 : i32
    %c0_i32_1 = arith.constant 0 : i32
    return %c0_i32, %c0_i32_0 : i32, i32
  }
  func.func @transform_2(%arg0: i32) -> (i32, i32) {
    %c0_i32 = arith.constant 0 : i32
    %c0_i32_0 = arith.constant 0 : i32
    %c0_i32_1 = arith.constant 0 : i32
    return %c0_i32, %c0_i32_0 : i32, i32
  }
  func.func @transform_3(%arg0: i32) -> (i32, i32) {
    %c0_i32 = arith.constant 0 : i32
    %c0_i32_0 = arith.constant 0 : i32
    %c0_i32_1 = arith.constant 0 : i32
    return %c0_i32, %c0_i32_0 : i32, i32
  }
  func.func @transform_4(%arg0: i32) -> (i32, i32) {
    %c0_i32 = arith.constant 0 : i32
    %c0_i32_0 = arith.constant 0 : i32
    %c0_i32_1 = arith.constant 0 : i32
    return %c0_i32, %c0_i32_0 : i32, i32
  }
  func.func @transform_5(%arg0: i32) -> (i32, i32) {
    %c0_i32 = arith.constant 0 : i32
    %c0_i32_0 = arith.constant 0 : i32
    %c0_i32_1 = arith.constant 0 : i32
    return %c0_i32, %c0_i32_0 : i32, i32
  }
  func.func @transform_6(%arg0: i32) -> (i32, i32) {
    %c0_i32 = arith.constant 0 : i32
    %c0_i32_0 = arith.constant 0 : i32
    %c0_i32_1 = arith.constant 0 : i32
    return %c0_i32, %c0_i32_0 : i32, i32
  }
  func.func @transform_7(%arg0: i32) -> (i32, i32) {
    %c0_i32 = arith.constant 0 : i32
    %c0_i32_0 = arith.constant 0 : i32
    %c0_i32_1 = arith.constant 0 : i32
    return %c0_i32, %c0_i32_0 : i32, i32
  }
  func.func @transform_8(%arg0: i32) -> (i32, i32) {
    %c0_i32 = arith.constant 0 : i32
    %c0_i32_0 = arith.constant 0 : i32
    %c0_i32_1 = arith.constant 0 : i32
    return %c0_i32, %c0_i32_0 : i32, i32
  }
  func.func @transform_9(%arg0: i32) -> (i32, i32) {
    %c0_i32 = arith.constant 0 : i32
    %c0_i32_0 = arith.constant 0 : i32
    return %arg0, %c0_i32 : i32, i32
  }
}

</mosaic_0001>

<llo_original>
// kernel: tpu_custom_call.1
$region0: #{tpu_custom_call.1}
  #allocation0 [shape = 'u32[]', space=smem, size = 0x4, offset = 0x4, fixed_abs, tag = 'smem constant byte address 0x4 - core index']
  #allocation1 [shape = 'u32[144,128]{1,0:T(1,128)}', space=vmem, size = 0x12000, scoped, tag = 'internal scratch']
  %s0 = inlined_call_operand.vmem [shape: f32[64,24], index: 0, kind: input, shape index: {}]
  %s1 = inlined_call_operand.vmem [shape: bf16[24,128], index: 1, kind: input, shape index: {}]
  %s2 = inlined_call_operand.vmem [shape: f32[1,128], index: 2, kind: input, shape index: {}]
  %s3 = inlined_call_operand.vmem [shape: bf16[128,128], index: 3, kind: input, shape index: {}]
  %s4 = inlined_call_operand.vmem [shape: f32[1,128], index: 4, kind: input, shape index: {}]
  %s5 = inlined_call_operand.hbm [shape: bf16[128,128], index: 5, kind: input, shape index: {}]
  %s6 = inlined_call_operand.vmem [shape: f32[1,128], index: 6, kind: input, shape index: {}]
  %s7 = inlined_call_operand.vmem [shape: f32[1,128], index: 7, kind: input, shape index: {}]
  %s8 = inlined_call_operand.vmem [shape: f32[1,128], index: 8, kind: input, shape index: {}]
  %s9 = inlined_call_operand.hbm [shape: bf16[64,128], index: 9, kind: output, shape index: {}]
  %s10 = sld [smem:[#allocation0]]
  $region73: #{tpu_custom_call.1} parent=0
    _
  %s12 = ssub.s32 1, %s10
  %s13 = scalar_select 0, %s12, %s10
  $region1: #{tpu_custom_call.1} parent=0
    #allocation2 [shape = 'u8[32768]{0}', space=vmem, size = 0x8000, scoped, tag = 'input window, operand 5, single buffered']
    #allocation3 [shape = 's32[2]{0}', space=sflag, size = 0x8, scoped, tag = 'scoped memory for tpu_custom_call.1']
    #allocation4 [shape = 's32[2]{0}', space=sflag, size = 0x8, scoped, tag = 'scoped memory for tpu_custom_call.1']
    #allocation5 [shape = 'u8[16384]{0}', space=vmem, size = 0x4000, scoped, tag = 'output window, operand 0']
    %14 = vsyncpa [#allocation3], 0
    %15 = vsyncpa [#allocation4], 0
    %s16 = scalar_lea.sflag [#allocation4], 1
    %17 = vsyncpa %s16, 0
    loop: start=0, step=1, limit=4
    $region2: #{tpu_custom_call.1} parent=1 // loop_pre_header
      _
    $region3: #{tpu_custom_call.1} parent=1 // loop_header
      %s19 = sphi 0, %s23
      %p20 = scmp.ge.s32.totalorder %s19, 4
      %s29 = sphi 0, %s31
      %s32 = sphi 0, %s29
      %s33 = sphi 0, %s32
      %s49 = sphi 0, %s33
      %s53 = sphi 0, %s53
      %s55 = sphi 0, %s53
      %s56 = sphi 0, %s55
      %s70 = sphi 0, %s56
      %s74 = sphi 0, %s74
      %s76 = sphi 0, %s74
      %s77 = sphi 0, %s76
      %s91 = sphi 0, %s77
      %s95 = sphi 0, %s95
      %s97 = sphi 0, %s95
      %s98 = sphi 0, %s97
      %s112 = sphi 0, %s98
      %s116 = sphi 0, %s116
      %s118 = sphi 0, %s116
      %s119 = sphi 0, %s118
      %s133 = sphi 0, %s119
      %s137 = sphi 0, %s137
      %s139 = sphi 0, %s137
      %s140 = sphi 0, %s139
      %s154 = sphi 0, %s140
      %s158 = sphi 0, %s158
      %s160 = sphi 0, %s158
      %s161 = sphi 0, %s160
      %s175 = sphi 0, %s161
      %s179 = sphi 0, %s179
      %s181 = sphi 0, %s179
      %s182 = sphi 0, %s181
      %s196 = sphi 0, %s182
      %s200 = sphi 0, %s200
      %s202 = sphi 0, %s200
      %s203 = sphi 0, %s202
      %s217 = sphi 0, %s203
      %s223 = sphi 0, %s225
      %s226 = sphi 0, %s223
      %s227 = sphi 0, %s226
      %s243 = sphi 0, %s227
    $region4: #{tpu_custom_call.1} parent=1 // loop_header_branch
      %22 = sbr.rel (%p20) target = $region8
    $region5: #{tpu_custom_call.1} parent=1 // loop_body
      %s24 = ssub.s32 %s19, 1
      %s25 = ssub.s32 %s19, 2
      %s26 = sadd.s32 %s19, 1
      %s27 = ssub.s32 %s19, %s26
      %p28 = scmp.eq.s32.totalorder %s27, 0
      %s30 = sadd.s32 %s29, 1
      %s31 = scalar_select %p28, %s29, %s30
      %p34 = pneg %p28
      %p35 = scmp.eq.s32.totalorder %s19, 1
      %p36 = por %p34, %p35
      %p37 = scmp.ne.s32.totalorder %s29, %s32
      %p38 = scmp.eq.s32.totalorder %s19, 0
      %p39 = por %p37, %p38
      %p40 = scmp.ne.s32.totalorder %s29, %s32
      %p41 = scmp.eq.s32.totalorder %s24, 1
      %p42 = por %p40, %p41
      %p43 = scmp.ne.s32.totalorder %s32, %s33
      %p44 = scmp.eq.s32.totalorder %s24, 0
      %p45 = por %p43, %p44
      %p46 = scmp.ne.s32.totalorder %s32, %s33
      %p47 = scmp.eq.s32.totalorder %s25, 1
      %p48 = por %p46, %p47
      %p50 = scmp.ne.s32.totalorder %s33, %s49
      %p51 = scmp.eq.s32.totalorder %s25, 0
      %p52 = por %p50, %p51
      %s54 = sadd.s32 %s53, 1
      %p57 = scmp.eq.s32.totalorder %s19, 1
      %p58 = scmp.ne.s32.totalorder %s53, %s55
      %p59 = scmp.eq.s32.totalorder %s19, 0
      %p60 = por %p58, %p59
      %p61 = scmp.ne.s32.totalorder %s53, %s55
      %p62 = scmp.eq.s32.totalorder %s24, 1
      %p63 = por %p61, %p62
      %p64 = scmp.ne.s32.totalorder %s55, %s56
      %p65 = scmp.eq.s32.totalorder %s24, 0
      %p66 = por %p64, %p65
      %p67 = scmp.ne.s32.totalorder %s55, %s56
      %p68 = scmp.eq.s32.totalorder %s25, 1
      %p69 = por %p67, %p68
      %p71 = scmp.ne.s32.totalorder %s56, %s70
      %p72 = scmp.eq.s32.totalorder %s25, 0
      %p73 = por %p71, %p72
      %s75 = sadd.s32 %s74, 1
      %p78 = scmp.eq.s32.totalorder %s19, 1
      %p79 = scmp.ne.s32.totalorder %s74, %s76
      %p80 = scmp.eq.s32.totalorder %s19, 0
      %p81 = por %p79, %p80
      %p82 = scmp.ne.s32.totalorder %s74, %s76
      %p83 = scmp.eq.s32.totalorder %s24, 1
      %p84 = por %p82, %p83
      %p85 = scmp.ne.s32.totalorder %s76, %s77
      %p86 = scmp.eq.s32.totalorder %s24, 0
      %p87 = por %p85, %p86
      %p88 = scmp.ne.s32.totalorder %s76, %s77
      %p89 = scmp.eq.s32.totalorder %s25, 1
      %p90 = por %p88, %p89
      %p92 = scmp.ne.s32.totalorder %s77, %s91
      %p93 = scmp.eq.s32.totalorder %s25, 0
      %p94 = por %p92, %p93
      %s96 = sadd.s32 %s95, 1
      %p99 = scmp.eq.s32.totalorder %s19, 1
      %p100 = scmp.ne.s32.totalorder %s95, %s97
      %p101 = scmp.eq.s32.totalorder %s19, 0
      %p102 = por %p100, %p101
      %p103 = scmp.ne.s32.totalorder %s95, %s97
      %p104 = scmp.eq.s32.totalorder %s24, 1
      %p105 = por %p103, %p104
      %p106 = scmp.ne.s32.totalorder %s97, %s98
      %p107 = scmp.eq.s32.totalorder %s24, 0
      %p108 = por %p106, %p107
      %p109 = scmp.ne.s32.totalorder %s97, %s98
      %p110 = scmp.eq.s32.totalorder %s25, 1
      %p111 = por %p109, %p110
      %p113 = scmp.ne.s32.totalorder %s98, %s112
      %p114 = scmp.eq.s32.totalorder %s25, 0
      %p115 = por %p113, %p114
      %s117 = sadd.s32 %s116, 1
      %p120 = scmp.eq.s32.totalorder %s19, 1
      %p121 = scmp.ne.s32.totalorder %s116, %s118
      %p122 = scmp.eq.s32.totalorder %s19, 0
      %p123 = por %p121, %p122
      %p124 = scmp.ne.s32.totalorder %s116, %s118
      %p125 = scmp.eq.s32.totalorder %s24, 1
      %p126 = por %p124, %p125
      %p127 = scmp.ne.s32.totalorder %s118, %s119
      %p128 = scmp.eq.s32.totalorder %s24, 0
      %p129 = por %p127, %p128
      %p130 = scmp.ne.s32.totalorder %s118, %s119
      %p131 = scmp.eq.s32.totalorder %s25, 1
      %p132 = por %p130, %p131
      %p134 = scmp.ne.s32.totalorder %s119, %s133
      %p135 = scmp.eq.s32.totalorder %s25, 0
      %p136 = por %p134, %p135
      %s138 = sadd.s32 %s137, 1
      %p141 = scmp.eq.s32.totalorder %s19, 1
      %p142 = scmp.ne.s32.totalorder %s137, %s139
      %p143 = scmp.eq.s32.totalorder %s19, 0
      %p144 = por %p142, %p143
      %p145 = scmp.ne.s32.totalorder %s137, %s139
      %p146 = scmp.eq.s32.totalorder %s24, 1
      %p147 = por %p145, %p146
      %p148 = scmp.ne.s32.totalorder %s139, %s140
      %p149 = scmp.eq.s32.totalorder %s24, 0
      %p150 = por %p148, %p149
      %p151 = scmp.ne.s32.totalorder %s139, %s140
      %p152 = scmp.eq.s32.totalorder %s25, 1
      %p153 = por %p151, %p152
      %p155 = scmp.ne.s32.totalorder %s140, %s154
      %p156 = scmp.eq.s32.totalorder %s25, 0
      %p157 = por %p155, %p156
      %s159 = sadd.s32 %s158, 1
      %p162 = scmp.eq.s32.totalorder %s19, 1
      %p163 = scmp.ne.s32.totalorder %s158, %s160
      %p164 = scmp.eq.s32.totalorder %s19, 0
      %p165 = por %p163, %p164
      %p166 = scmp.ne.s32.totalorder %s158, %s160
      %p167 = scmp.eq.s32.totalorder %s24, 1
      %p168 = por %p166, %p167
      %p169 = scmp.ne.s32.totalorder %s160, %s161
      %p170 = scmp.eq.s32.totalorder %s24, 0
      %p171 = por %p169, %p170
      %p172 = scmp.ne.s32.totalorder %s160, %s161
      %p173 = scmp.eq.s32.totalorder %s25, 1
      %p174 = por %p172, %p173
      %p176 = scmp.ne.s32.totalorder %s161, %s175
      %p177 = scmp.eq.s32.totalorder %s25, 0
      %p178 = por %p176, %p177
      %s180 = sadd.s32 %s179, 1
      %p183 = scmp.eq.s32.totalorder %s19, 1
      %p184 = scmp.ne.s32.totalorder %s179, %s181
      %p185 = scmp.eq.s32.totalorder %s19, 0
      %p186 = por %p184, %p185
      %p187 = scmp.ne.s32.totalorder %s179, %s181
      %p188 = scmp.eq.s32.totalorder %s24, 1
      %p189 = por %p187, %p188
      %p190 = scmp.ne.s32.totalorder %s181, %s182
      %p191 = scmp.eq.s32.totalorder %s24, 0
      %p192 = por %p190, %p191
      %p193 = scmp.ne.s32.totalorder %s181, %s182
      %p194 = scmp.eq.s32.totalorder %s25, 1
      %p195 = por %p193, %p194
      %p197 = scmp.ne.s32.totalorder %s182, %s196
      %p198 = scmp.eq.s32.totalorder %s25, 0
      %p199 = por %p197, %p198
      %s201 = sadd.s32 %s200, 1
      %p204 = scmp.eq.s32.totalorder %s19, 1
      %p205 = scmp.ne.s32.totalorder %s200, %s202
      %p206 = scmp.eq.s32.totalorder %s19, 0
      %p207 = por %p205, %p206
      %p208 = scmp.ne.s32.totalorder %s200, %s202
      %p209 = scmp.eq.s32.totalorder %s24, 1
      %p210 = por %p208, %p209
      %p211 = scmp.ne.s32.totalorder %s202, %s203
      %p212 = scmp.eq.s32.totalorder %s24, 0
      %p213 = por %p211, %p212
      %p214 = scmp.ne.s32.totalorder %s202, %s203
      %p215 = scmp.eq.s32.totalorder %s25, 1
      %p216 = por %p214, %p215
      %p218 = scmp.ne.s32.totalorder %s203, %s217
      %p219 = scmp.eq.s32.totalorder %s25, 0
      %p220 = por %p218, %p219
      %s221 = ssub.s32 %s19, %s26
      %p222 = scmp.eq.s32.totalorder %s221, 0
      %s224 = sadd.s32 %s223, 1
      %s225 = scalar_select %p222, %s223, %s224
      %p228 = pneg %p222
      %p229 = scmp.eq.s32.totalorder %s19, 1
      %p230 = por %p228, %p229
      %p231 = scmp.ne.s32.totalorder %s223, %s226
      %p232 = scmp.eq.s32.totalorder %s19, 0
      %p233 = por %p231, %p232
      %p234 = scmp.ne.s32.totalorder %s223, %s226
      %p235 = scmp.eq.s32.totalorder %s24, 1
      %p236 = por %p234, %p235
      %p237 = scmp.ne.s32.totalorder %s226, %s227
      %p238 = scmp.eq.s32.totalorder %s24, 0
      %p239 = por %p237, %p238
      %p240 = scmp.ne.s32.totalorder %s226, %s227
      %p241 = scmp.eq.s32.totalorder %s25, 1
      %p242 = por %p240, %p241
      %p244 = scmp.ne.s32.totalorder %s227, %s243
      %p245 = scmp.eq.s32.totalorder %s25, 0
      %p246 = por %p244, %p245
      %p247 = scmp.le.s32.totalorder 1, %s19
      %p248 = scmp.lt.s32.totalorder %s19, 3
      %p249 = pnand %p247, %p248
      %p250 = pneg %p249
      // Predicated region
      $region9: #{tpu_custom_call.1} parent=5 // pred_check
        _
      $region10: #{tpu_custom_call.1} parent=5 // pred_check_branch
        %252 = sbr.rel (%p249) target = $region12
      $region11: #{tpu_custom_call.1} parent=5 // pred_region
        %s253 = ssub.s32 %s19, 1
        // Predicated region
        $region13: #{tpu_custom_call.1} parent=11 // pred_check
          %p254 = pneg %p66
        $region14: #{tpu_custom_call.1} parent=11 // pred_check_branch
          %256 = sbr.rel (%p254) target = $region16
        $region15: #{tpu_custom_call.1} parent=11 // pred_region
          _
        $region16: #{tpu_custom_call.1} parent=11 // pred_fallthru
          _
        // Predicated region
        $region17: #{tpu_custom_call.1} parent=11 // pred_check
          %p257 = pneg %p87
        $region18: #{tpu_custom_call.1} parent=11 // pred_check_branch
          %259 = sbr.rel (%p257) target = $region20
        $region19: #{tpu_custom_call.1} parent=11 // pred_region
          _
        $region20: #{tpu_custom_call.1} parent=11 // pred_fallthru
          _
        // Predicated region
        $region21: #{tpu_custom_call.1} parent=11 // pred_check
          %p260 = pneg %p108
        $region22: #{tpu_custom_call.1} parent=11 // pred_check_branch
          %262 = sbr.rel (%p260) target = $region24
        $region23: #{tpu_custom_call.1} parent=11 // pred_region
          _
        $region24: #{tpu_custom_call.1} parent=11 // pred_fallthru
          _
        // Predicated region
        $region25: #{tpu_custom_call.1} parent=11 // pred_check
          %p263 = pneg %p129
        $region26: #{tpu_custom_call.1} parent=11 // pred_check_branch
          %265 = sbr.rel (%p263) target = $region28
        $region27: #{tpu_custom_call.1} parent=11 // pred_region
          _
        $region28: #{tpu_custom_call.1} parent=11 // pred_fallthru
          _
        // Predicated region
        $region29: #{tpu_custom_call.1} parent=11 // pred_check
          %p266 = pneg %p150
        $region30: #{tpu_custom_call.1} parent=11 // pred_check_branch
          %268 = sbr.rel (%p266) target = $region32
        $region31: #{tpu_custom_call.1} parent=11 // pred_region
          %s270 = ssub.s32 1024, 1024
          %271 = vsyncadd [#allocation3], %s270
          %s272 = sshll.u32 [#allocation2], 4
          %s273 = int_to_ptr.vmem [resolvable:$true] %s272
          %278 = dma.hbm_to_vmem [thread:$0]  %s5, 1024, %s273, [#allocation3], 64, 64, 4
        $region32: #{tpu_custom_call.1} parent=11 // pred_fallthru
          _
        // Predicated region
        $region33: #{tpu_custom_call.1} parent=11 // pred_check
          %p279 = pneg %p171
        $region34: #{tpu_custom_call.1} parent=11 // pred_check_branch
          %281 = sbr.rel (%p279) target = $region36
        $region35: #{tpu_custom_call.1} parent=11 // pred_region
          _
        $region36: #{tpu_custom_call.1} parent=11 // pred_fallthru
          _
        // Predicated region
        $region37: #{tpu_custom_call.1} parent=11 // pred_check
          %p282 = pneg %p192
        $region38: #{tpu_custom_call.1} parent=11 // pred_check_branch
          %284 = sbr.rel (%p282) target = $region40
        $region39: #{tpu_custom_call.1} parent=11 // pred_region
          _
        $region40: #{tpu_custom_call.1} parent=11 // pred_fallthru
          _
        // Predicated region
        $region41: #{tpu_custom_call.1} parent=11 // pred_check
          %p285 = pneg %p213
        $region42: #{tpu_custom_call.1} parent=11 // pred_check_branch
          %287 = sbr.rel (%p285) target = $region44
        $region43: #{tpu_custom_call.1} parent=11 // pred_region
          _
        $region44: #{tpu_custom_call.1} parent=11 // pred_fallthru
          _
      $region12: #{tpu_custom_call.1} parent=5 // pred_fallthru
        _
      %p288 = scmp.lt.s32.totalorder %s19, 2
      // Predicated region
      $region45: #{tpu_custom_call.1} parent=5 // pred_check
        %p289 = pneg %p288
      $region46: #{tpu_custom_call.1} parent=5 // pred_check_branch
        %291 = sbr.rel (%p289) target = $region48
      $region47: #{tpu_custom_call.1} parent=5 // pred_region
        // Predicated region
        $region49: #{tpu_custom_call.1} parent=47 // pred_check
          %p292 = pneg %p39
        $region50: #{tpu_custom_call.1} parent=47 // pred_check_branch
          %294 = sbr.rel (%p292) target = $region52
        $region51: #{tpu_custom_call.1} parent=47 // pred_region
          %s295 = smul.u32 4, %s19
          %p296 = scmp.lt.s32.totalorder %s295, 7
          %s297 = scalar_select %p296, %s295, 7
          %s298 = smul.addr %s297, 8
          %s299 = scalar_lea.vmem %s0, %s298
          %s300 = smul.u32 4, %s19
        $region52: #{tpu_custom_call.1} parent=47 // pred_fallthru
          _
      $region48: #{tpu_custom_call.1} parent=5 // pred_fallthru
        _
      %p301 = scmp.le.s32.totalorder 1, %s19
      %p302 = scmp.lt.s32.totalorder %s19, 3
      %p303 = pnand %p301, %p302
      %p304 = pneg %p303
      // Predicated region
      $region53: #{tpu_custom_call.1} parent=5 // pred_check
        _
      $region54: #{tpu_custom_call.1} parent=5 // pred_check_branch
        %306 = sbr.rel (%p303) target = $region56
      $region55: #{tpu_custom_call.1} parent=5 // pred_region
        %s307 = ssub.s32 %s19, 1
        // Predicated region
        $region57: #{tpu_custom_call.1} parent=55 // pred_check
          %p308 = pneg %p150
        $region58: #{tpu_custom_call.1} parent=55 // pred_check_branch
          %310 = sbr.rel (%p308) target = $region60
        $region59: #{tpu_custom_call.1} parent=55 // pred_region
          %311 = dma.done [#allocation3], 1024
        $region60: #{tpu_custom_call.1} parent=55 // pred_fallthru
          _
        %s312 = smul.u32 4, %s24
        %p313 = scmp.lt.s32.totalorder %s312, 7
        %s314 = scalar_select %p313, %s312, 7
        %s315 = smul.addr %s314, 8
        %s316 = scalar_lea.vmem %s0, %s315
        %p317 = pneg %p45
        %p318 = pneg %p42
        %p319 = pneg %p66
        %p320 = pneg %p63
        %p321 = pneg %p87
        %p322 = pneg %p84
        %p323 = pneg %p108
        %p324 = pneg %p105
        %p325 = pneg %p129
        %p326 = pneg %p126
        %p327 = pneg %p150
        %p328 = pneg %p147
        %p329 = pneg %p171
        %p330 = pneg %p168
        %p331 = pneg %p192
        %p332 = pneg %p189
        %p333 = pneg %p213
        %p334 = pneg %p210
        %p335 = pneg %p239
        %p336 = pneg %p236
        %s337 = sand.u32 %s226, 1
        %s338 = scalar_lea.sflag [#allocation4], %s337
        %s339 = sand.u32 %s226, 1
        %s340 = smul.addr %s339, 16
        %s341 = scalar_lea.vmem [#allocation5], %s340
        %s342 = smul.u32 4, %s24
        %p343 = scmp.lt.s32.totalorder %s342, 7
        %s344 = scalar_select %p343, %s342, 7
        %s345 = smul.addr %s344, 8
        %s346 = scalar_lea.vmem %s0, %s345
        %s347 = smul.u32 4, %s24
        %s348 = smul.u32 4, %s24
        %v350 = vld [vmem:[%s346] sm:$0xff]
        %v351 = vld [vmem:[%s346 + $0x8] sm:$0xff]
        %v352 = vld [vmem:[%s346 + $0x10] sm:$0xff]
        %v353 = vld [vmem:[%s346 + $0x18] sm:$0xff]
        %v354 = vpack.c.bf16 %v351, %v350
        %v355 = vpack.c.bf16 %v353, %v352
        %v356 = vld [vmem:[%s1] sm:$0xf]
        %v357 = vld [vmem:[%s1 + $0x4] sm:$0xf]
        %v358 = vld [vmem:[%s1 + $0x8] sm:$0xf]
        %v359 = vld [vmem:[%s3] sm:$0xf]
        %v360 = vld [vmem:[%s3 + $0x4] sm:$0xf]
        %v361 = vld [vmem:[%s3 + $0x8] sm:$0xf]
        %v362 = vld [vmem:[%s3 + $0xc] sm:$0xf]
        %v363 = vld [vmem:[%s3 + $0x10] sm:$0xf]
        %v364 = vld [vmem:[%s3 + $0x14] sm:$0xf]
        %v365 = vld [vmem:[%s3 + $0x18] sm:$0xf]
        %v366 = vld [vmem:[%s3 + $0x1c] sm:$0xf]
        %v367 = vld [vmem:[%s3 + $0x20] sm:$0xf]
        %v368 = vld [vmem:[%s3 + $0x24] sm:$0xf]
        %v369 = vld [vmem:[%s3 + $0x28] sm:$0xf]
        %v370 = vld [vmem:[%s3 + $0x2c] sm:$0xf]
        %v371 = vld [vmem:[%s3 + $0x30] sm:$0xf]
        %v372 = vld [vmem:[%s3 + $0x34] sm:$0xf]
        %v373 = vld [vmem:[%s3 + $0x38] sm:$0xf]
        %v374 = vld [vmem:[%s3 + $0x3c] sm:$0xf]
        %v375 = vld [vmem:[#allocation2] sm:$0xf]
        %v376 = vld [vmem:[#allocation2 + $0x4] sm:$0xf]
        %v377 = vld [vmem:[#allocation2 + $0x8] sm:$0xf]
        %v378 = vld [vmem:[#allocation2 + $0xc] sm:$0xf]
        %v379 = vld [vmem:[#allocation2 + $0x10] sm:$0xf]
        %v380 = vld [vmem:[#allocation2 + $0x14] sm:$0xf]
        %v381 = vld [vmem:[#allocation2 + $0x18] sm:$0xf]
        %v382 = vld [vmem:[#allocation2 + $0x1c] sm:$0xf]
        %v383 = vld [vmem:[#allocation2 + $0x20] sm:$0xf]
        %v384 = vld [vmem:[#allocation2 + $0x24] sm:$0xf]
        %v385 = vld [vmem:[#allocation2 + $0x28] sm:$0xf]
        %v386 = vld [vmem:[#allocation2 + $0x2c] sm:$0xf]
        %v387 = vld [vmem:[#allocation2 + $0x30] sm:$0xf]
        %v388 = vld [vmem:[#allocation2 + $0x34] sm:$0xf]
        %v389 = vld [vmem:[#allocation2 + $0x38] sm:$0xf]
        %v390 = vld [vmem:[#allocation2 + $0x3c] sm:$0xf]
        %v391 = vld [vmem:[%s2] sm:$0x1]
        %v392 = vld [vmem:[%s4] sm:$0x1]
        %v393 = vld [vmem:[%s6] sm:$0x1]
        %v394 = vld [vmem:[%s7] sm:$0x1]
        %v395 = vld [vmem:[%s8] sm:$0x1]
        %v397 = vlaneseq
        %v398 = vshrl.u32 %v397, 7
        %v399 = vsub.s32 0, %v398
        %v400 = vrot.slane %v391, %v399
        %v405 = vunpack.c.l.b16 %v356
        %v406 = vunpack.c.l.b16 %v357
        %v407 = vunpack.c.l.b16 %v358
        %v408 = vpack.c.b16 %v406, %v405
        %v409 = vpack.c.b16 %v407, %v407
        %vm411 = vcmask 195584
        %v413 = vsel %vm411, %v354, 0
        %v416 = vsel %vm411, %v355, 0
        %vm418 = vcmask 1043456
        %v420 = vsel %vm418, %v409, 0
        %422 = vmatprep.subr.bf16.mxu0 0
        %423 = vmatpush1.bf16.msra.mxu0 %v408
        %424 = vmatprep.subr.bf16.mxu0 0
        %425 = vmatpush1.bf16.msra.mxu0 %v420
        %426 = vmatprep.subr.bf16.mxu0 0
        %427 = vmatpush1.bf16.msra.mxu0 0
        %428 = vmatprep.subr.bf16.mxu0 0
        %429 = vmatpush1.bf16.msra.mxu0 0
        %430 = vmatprep.subr.bf16.mxu0 0
        %431 = vmatpush1.bf16.msra.mxu0 0
        %432 = vmatprep.subr.bf16.mxu0 0
        %433 = vmatpush1.bf16.msra.mxu0 0
        %434 = vmatprep.subr.bf16.mxu0 0
        %435 = vmatpush1.bf16.msra.mxu0 0
        %436 = vmatprep.subr.bf16.mxu0 0
        %437 = vmatpush1.bf16.msra.mxu0 0
        %438 = vmatprep.subr.bf16.mxu0 0
        %439 = vmatpush1.bf16.msra.mxu0 0
        %440 = vmatprep.subr.bf16.mxu0 0
        %441 = vmatpush1.bf16.msra.mxu0 0
        %442 = vmatprep.subr.bf16.mxu0 0
        %443 = vmatpush1.bf16.msra.mxu0 0
        %444 = vmatprep.subr.bf16.mxu0 0
        %445 = vmatpush1.bf16.msra.mxu0 0
        %446 = vmatprep.subr.bf16.mxu0 0
        %447 = vmatpush1.bf16.msra.mxu0 0
        %448 = vmatprep.subr.bf16.mxu0 0
        %449 = vmatpush1.bf16.msra.mxu0 0
        %450 = vmatprep.subr.bf16.mxu0 0
        %451 = vmatpush1.bf16.msra.mxu0 0
        %452 = vmatprep.subr.bf16.mxu0 0
        %453 = vmatpush1.bf16.msra.mxu0 0
        %454 = vmatprep.mubr.bf16.mxu0 0
        %455 = vmatmul.mubr.bf16.gmra.mrb[0].mxu0 %v413
        %v456 = vpop.f32.mrb[0].mxu0
        %v457 = vadd.f32 %v400, %v456
        %v458 = vpop.f32.mrb[0].mxu0
        %v459 = vpop.f32.mrb[0].mxu0
        %v460 = vadd.f32 %v400, %v459
        %v461 = vpop.f32.mrb[0].mxu0
        %462 = vmatprep.mubr.bf16.mxu0 0
        %463 = vmatmul.mubr.bf16.gmra.mrb[0].mxu0 %v416
        %v464 = vpop.f32.mrb[0].mxu0
        %v465 = vadd.f32 %v400, %v464
        %v466 = vpop.f32.mrb[0].mxu0
        %v467 = vpop.f32.mrb[0].mxu0
        %v468 = vadd.f32 %v400, %v467
        %v469 = vpop.f32.mrb[0].mxu0
        %470 = vdwg.mxu0
        %v471 = vmax.f32 %v457, 0.0
        %v472 = vmax.f32 %v460, 0.0
        %v473 = vmax.f32 %v465, 0.0
        %v474 = vmax.f32 %v468, 0.0
        %v475 = vpack.c.bf16 %v472, %v471
        %v476 = vpack.c.bf16 %v474, %v473
        %v478 = vlaneseq
        %v479 = vshrl.u32 %v478, 7
        %v480 = vsub.s32 0, %v479
        %v481 = vrot.slane %v392, %v480
        %v499 = vunpack.c.l.b16 %v359
        %v500 = vunpack.c.l.b16 %v360
        %v501 = vunpack.c.l.b16 %v361
        %v502 = vunpack.c.l.b16 %v362
        %v503 = vunpack.c.l.b16 %v363
        %v504 = vunpack.c.l.b16 %v364
        %v505 = vunpack.c.l.b16 %v365
        %v506 = vunpack.c.l.b16 %v366
        %v507 = vunpack.c.l.b16 %v367
        %v508 = vunpack.c.l.b16 %v368
        %v509 = vunpack.c.l.b16 %v369
        %v510 = vunpack.c.l.b16 %v370
        %v511 = vunpack.c.l.b16 %v371
        %v512 = vunpack.c.l.b16 %v372
        %v513 = vunpack.c.l.b16 %v373
        %v514 = vunpack.c.l.b16 %v374
        %v515 = vpack.c.b16 %v500, %v499
        %v516 = vpack.c.b16 %v502, %v501
        %v517 = vpack.c.b16 %v504, %v503
        %v518 = vpack.c.b16 %v506, %v505
        %v519 = vpack.c.b16 %v508, %v507
        %v520 = vpack.c.b16 %v510, %v509
        %v521 = vpack.c.b16 %v512, %v511
        %v522 = vpack.c.b16 %v514, %v513
        %531 = vmatprep.subr.bf16.mxu0 0
        %532 = vmatpush1.bf16.msra.mxu0 %v515
        %533 = vmatprep.subr.bf16.mxu0 0
        %534 = vmatpush1.bf16.msra.mxu0 %v516
        %535 = vmatprep.subr.bf16.mxu0 0
        %536 = vmatpush1.bf16.msra.mxu0 %v517
        %537 = vmatprep.subr.bf16.mxu0 0
        %538 = vmatpush1.bf16.msra.mxu0 %v518
        %539 = vmatprep.subr.bf16.mxu0 0
        %540 = vmatpush1.bf16.msra.mxu0 %v519
        %541 = vmatprep.subr.bf16.mxu0 0
        %542 = vmatpush1.bf16.msra.mxu0 %v520
        %543 = vmatprep.subr.bf16.mxu0 0
        %544 = vmatpush1.bf16.msra.mxu0 %v521
        %545 = vmatprep.subr.bf16.mxu0 0
        %546 = vmatpush1.bf16.msra.mxu0 %v522
        %547 = vmatprep.subr.bf16.mxu0 0
        %548 = vmatpush1.bf16.msra.mxu0 0
        %549 = vmatprep.subr.bf16.mxu0 0
        %550 = vmatpush1.bf16.msra.mxu0 0
        %551 = vmatprep.subr.bf16.mxu0 0
        %552 = vmatpush1.bf16.msra.mxu0 0
        %553 = vmatprep.subr.bf16.mxu0 0
        %554 = vmatpush1.bf16.msra.mxu0 0
        %555 = vmatprep.subr.bf16.mxu0 0
        %556 = vmatpush1.bf16.msra.mxu0 0
        %557 = vmatprep.subr.bf16.mxu0 0
        %558 = vmatpush1.bf16.msra.mxu0 0
        %559 = vmatprep.subr.bf16.mxu0 0
        %560 = vmatpush1.bf16.msra.mxu0 0
        %561 = vmatprep.subr.bf16.mxu0 0
        %562 = vmatpush1.bf16.msra.mxu0 0
        %563 = vmatprep.mubr.bf16.mxu0 0
        %564 = vmatmul.mubr.bf16.gmra.mrb[0].mxu0 %v475
        %v565 = vpop.f32.mrb[0].mxu0
        %v566 = vadd.f32 %v481, %v565
        %v567 = vpop.f32.mrb[0].mxu0
        %v568 = vpop.f32.mrb[0].mxu0
        %v569 = vadd.f32 %v481, %v568
        %v570 = vpop.f32.mrb[0].mxu0
        %571 = vmatprep.mubr.bf16.mxu0 0
        %572 = vmatmul.mubr.bf16.gmra.mrb[0].mxu0 %v476
        %v573 = vpop.f32.mrb[0].mxu0
        %v574 = vadd.f32 %v481, %v573
        %v575 = vpop.f32.mrb[0].mxu0
        %v576 = vpop.f32.mrb[0].mxu0
        %v577 = vadd.f32 %v481, %v576
        %v578 = vpop.f32.mrb[0].mxu0
        %579 = vdwg.mxu0
        %v580 = vmax.f32 %v566, 0.0
        %v581 = vmax.f32 %v569, 0.0
        %v582 = vmax.f32 %v574, 0.0
        %v583 = vmax.f32 %v577, 0.0
        %v584 = vpack.c.bf16 %v581, %v580
        %v585 = vpack.c.bf16 %v583, %v582
        %v587 = vlaneseq
        %v588 = vshrl.u32 %v587, 7
        %v589 = vsub.s32 0, %v588
        %v590 = vrot.slane %v393, %v589
        %v608 = vunpack.c.l.b16 %v375
        %v609 = vunpack.c.l.b16 %v376
        %v610 = vunpack.c.l.b16 %v377
        %v611 = vunpack.c.l.b16 %v378
        %v612 = vunpack.c.l.b16 %v379
        %v613 = vunpack.c.l.b16 %v380
        %v614 = vunpack.c.l.b16 %v381
        %v615 = vunpack.c.l.b16 %v382
        %v616 = vunpack.c.l.b16 %v383
        %v617 = vunpack.c.l.b16 %v384
        %v618 = vunpack.c.l.b16 %v385
        %v619 = vunpack.c.l.b16 %v386
        %v620 = vunpack.c.l.b16 %v387
        %v621 = vunpack.c.l.b16 %v388
        %v622 = vunpack.c.l.b16 %v389
        %v623 = vunpack.c.l.b16 %v390
        %v624 = vpack.c.b16 %v609, %v608
        %v625 = vpack.c.b16 %v611, %v610
        %v626 = vpack.c.b16 %v613, %v612
        %v627 = vpack.c.b16 %v615, %v614
        %v628 = vpack.c.b16 %v617, %v616
        %v629 = vpack.c.b16 %v619, %v618
        %v630 = vpack.c.b16 %v621, %v620
        %v631 = vpack.c.b16 %v623, %v622
        %640 = vmatprep.subr.bf16.mxu0 0
        %641 = vmatpush1.bf16.msra.mxu0 %v624
        %642 = vmatprep.subr.bf16.mxu0 0
        %643 = vmatpush1.bf16.msra.mxu0 %v625
        %644 = vmatprep.subr.bf16.mxu0 0
        %645 = vmatpush1.bf16.msra.mxu0 %v626
        %646 = vmatprep.subr.bf16.mxu0 0
        %647 = vmatpush1.bf16.msra.mxu0 %v627
        %648 = vmatprep.subr.bf16.mxu0 0
        %649 = vmatpush1.bf16.msra.mxu0 %v628
        %650 = vmatprep.subr.bf16.mxu0 0
        %651 = vmatpush1.bf16.msra.mxu0 %v629
        %652 = vmatprep.subr.bf16.mxu0 0
        %653 = vmatpush1.bf16.msra.mxu0 %v630
        %654 = vmatprep.subr.bf16.mxu0 0
        %655 = vmatpush1.bf16.msra.mxu0 %v631
        %656 = vmatprep.subr.bf16.mxu0 0
        %657 = vmatpush1.bf16.msra.mxu0 0
        %658 = vmatprep.subr.bf16.mxu0 0
        %659 = vmatpush1.bf16.msra.mxu0 0
        %660 = vmatprep.subr.bf16.mxu0 0
        %661 = vmatpush1.bf16.msra.mxu0 0
        %662 = vmatprep.subr.bf16.mxu0 0
        %663 = vmatpush1.bf16.msra.mxu0 0
        %664 = vmatprep.subr.bf16.mxu0 0
        %665 = vmatpush1.bf16.msra.mxu0 0
        %666 = vmatprep.subr.bf16.mxu0 0
        %667 = vmatpush1.bf16.msra.mxu0 0
        %668 = vmatprep.subr.bf16.mxu0 0
        %669 = vmatpush1.bf16.msra.mxu0 0
        %670 = vmatprep.subr.bf16.mxu0 0
        %671 = vmatpush1.bf16.msra.mxu0 0
        %672 = vmatprep.mubr.bf16.mxu0 0
        %673 = vmatmul.mubr.bf16.gmra.mrb[0].mxu0 %v584
        %v674 = vpop.f32.mrb[0].mxu0
        %v675 = vadd.f32 %v590, %v674
        %v676 = vpop.f32.mrb[0].mxu0
        %v677 = vpop.f32.mrb[0].mxu0
        %v678 = vadd.f32 %v590, %v677
        %v679 = vpop.f32.mrb[0].mxu0
        %680 = vmatprep.mubr.bf16.mxu0 0
        %681 = vmatmul.mubr.bf16.gmra.mrb[0].mxu0 %v585
        %v682 = vpop.f32.mrb[0].mxu0
        %v683 = vadd.f32 %v590, %v682
        %v684 = vpop.f32.mrb[0].mxu0
        %v685 = vpop.f32.mrb[0].mxu0
        %v686 = vadd.f32 %v590, %v685
        %v687 = vpop.f32.mrb[0].mxu0
        %688 = vdwg.mxu0
        %689 = vadd.xlane.f32.xlu0 %v675
        %v690 = vpop.xlane.xlu0 %689
        %691 = vadd.xlane.f32.xlu0 %v678
        %v692 = vpop.xlane.xlu0 %691
        %693 = vadd.xlane.f32.xlu0 %v683
        %v694 = vpop.xlane.xlu0 %693
        %695 = vadd.xlane.f32.xlu0 %v686
        %v696 = vpop.xlane.xlu0 %695
        %v697 = vmul.f32 %v690, 0.03125
        %v698 = vmul.f32 %v692, 0.03125
        %v699 = vmul.f32 %v694, 0.03125
        %v700 = vmul.f32 %v696, 0.03125
        %v701 = vmul.f32 %v675, %v675
        %v702 = vmul.f32 %v678, %v678
        %v703 = vmul.f32 %v683, %v683
        %v704 = vmul.f32 %v686, %v686
        %705 = vadd.xlane.f32.xlu0 %v701
        %v706 = vpop.xlane.xlu0 %705
        %707 = vadd.xlane.f32.xlu0 %v702
        %v708 = vpop.xlane.xlu0 %707
        %709 = vadd.xlane.f32.xlu0 %v703
        %v710 = vpop.xlane.xlu0 %709
        %711 = vadd.xlane.f32.xlu0 %v704
        %v712 = vpop.xlane.xlu0 %711
        %v713 = vmul.f32 %v706, 0.03125
        %v714 = vmul.f32 %v708, 0.03125
        %v715 = vmul.f32 %v710, 0.03125
        %v716 = vmul.f32 %v712, 0.03125
        %v717 = vmul.f32 %v697, %v697
        %v718 = vmul.f32 %v698, %v698
        %v719 = vmul.f32 %v699, %v699
        %v720 = vmul.f32 %v700, %v700
        %v721 = vsub.f32 %v713, %v717
        %v722 = vsub.f32 %v714, %v718
        %v723 = vsub.f32 %v715, %v719
        %v724 = vsub.f32 %v716, %v720
        %v725 = vadd.f32 %v721, 1e-05
        %v726 = vadd.f32 %v722, 1e-05
        %v727 = vadd.f32 %v723, 1e-05
        %v728 = vadd.f32 %v724, 1e-05
        %v729 = vrsqrt.pop %v725
        %v730 = vrsqrt.pop %v726
        %v731 = vrsqrt.pop %v727
        %v732 = vrsqrt.pop %v728
        %v733 = vsub.f32 %v675, %v697
        %v734 = vsub.f32 %v678, %v698
        %v735 = vsub.f32 %v683, %v699
        %v736 = vsub.f32 %v686, %v700
        %v737 = vmul.f32 %v733, %v729
        %v738 = vmul.f32 %v734, %v730
        %v739 = vmul.f32 %v735, %v731
        %v740 = vmul.f32 %v736, %v732
        %v742 = vlaneseq
        %v743 = vshrl.u32 %v742, 7
        %v744 = vsub.s32 0, %v743
        %v745 = vrot.slane %v394, %v744
        %v747 = vmul.f32 %v737, %v745
        %v748 = vmul.f32 %v738, %v745
        %v749 = vmul.f32 %v739, %v745
        %v750 = vmul.f32 %v740, %v745
        %v752 = vlaneseq
        %v753 = vshrl.u32 %v752, 7
        %v754 = vsub.s32 0, %v753
        %v755 = vrot.slane %v395, %v754
        %v757 = vadd.f32 %v747, %v755
        %v758 = vadd.f32 %v748, %v755
        %v759 = vadd.f32 %v749, %v755
        %v760 = vadd.f32 %v750, %v755
        %v761 = vpack.c.bf16 %v758, %v757
        %v762 = vpack.c.bf16 %v760, %v759
        %v763 = vtanh.bf16.pop %v761
        %v764 = vtanh.bf16.pop %v762
        %v767 = vunpack.c.l.b16 %v763
        %v768 = vunpack.c.h.b16 %v763
        %v769 = vunpack.c.l.b16 %v764
        %v770 = vunpack.c.h.b16 %v764
        %v771 = vpack.c.b16 %v767, %v767
        %v772 = vpack.c.b16 %v768, %v768
        %v773 = vpack.c.b16 %v769, %v769
        %v774 = vpack.c.b16 %v770, %v770
        %779 = vst [vmem:[%s341] sm:$0xf] %v771
        %780 = vst [vmem:[%s341 + $0x4] sm:$0xf] %v772
        %781 = vst [vmem:[%s341 + $0x8] sm:$0xf] %v773
        %782 = vst [vmem:[%s341 + $0xc] sm:$0xf] %v774
        %s783 = sand.u32 %s226, 1
        %s784 = scalar_lea.sflag [#allocation4], %s783
        %s785 = sand.u32 %s226, 1
        %s786 = smul.addr %s785, 16
        %s787 = scalar_lea.vmem [#allocation5], %s786
        // Predicated region
        $region61: #{tpu_custom_call.1} parent=55 // pred_check
          %p788 = pneg %p236
        $region62: #{tpu_custom_call.1} parent=55 // pred_check_branch
          %790 = sbr.rel (%p788) target = $region64
        $region63: #{tpu_custom_call.1} parent=55 // pred_region
          %s791 = smul.u32 4, %s24
          %s793 = ssub.s32 256, 256
          %794 = vsyncadd %s784, %s793
          %s795 = smul.addr %s791, 64
          %s796 = scalar_lea.hbm %s9, %s795
          %s797 = sshll.u32 %s787, 4
          %s798 = int_to_ptr.vmem [resolvable:$true] %s797
          %803 = dma.vmem_to_hbm [thread:$0]  %s798, 256, %s796, %s784, 64, 64, 4
        $region64: #{tpu_custom_call.1} parent=55 // pred_fallthru
          _
      $region56: #{tpu_custom_call.1} parent=5 // pred_fallthru
        _
      %p804 = scmp.le.s32.totalorder 2, %s19
      // Predicated region
      $region65: #{tpu_custom_call.1} parent=5 // pred_check
        %p805 = pneg %p804
      $region66: #{tpu_custom_call.1} parent=5 // pred_check_branch
        %807 = sbr.rel (%p805) target = $region68
      $region67: #{tpu_custom_call.1} parent=5 // pred_region
        %s808 = ssub.s32 %s19, 2
        // Predicated region
        $region69: #{tpu_custom_call.1} parent=67 // pred_check
          %p809 = pneg %p242
        $region70: #{tpu_custom_call.1} parent=67 // pred_check_branch
          %811 = sbr.rel (%p809) target = $region72
        $region71: #{tpu_custom_call.1} parent=67 // pred_region
          %s812 = sand.u32 %s227, 1
          %s813 = scalar_lea.sflag [#allocation4], %s812
          %s814 = sand.u32 %s227, 1
          %s815 = smul.addr %s814, 16
          %s816 = scalar_lea.vmem [#allocation5], %s815
          %817 = dma.done %s813, 256
        $region72: #{tpu_custom_call.1} parent=67 // pred_fallthru
          _
      $region68: #{tpu_custom_call.1} parent=5 // pred_fallthru
        _
    $region6: #{tpu_custom_call.1} parent=1 // loop_footer
      %s23 = sadd.s32 1, %s19
    $region7: #{tpu_custom_call.1} parent=1 // loop_footer_branch
      %18 = sbr.rel target = $region3
    $region8: #{tpu_custom_call.1} parent=1 // loop_exit
      _
    %818 = vsyncpa [#allocation3], 1
    %s819 = scalar_lea.sflag [#allocation3], 1
    %820 = vsyncpa %s819, 1
    %821 = vsyncpa [#allocation4], 1
    %s822 = scalar_lea.sflag [#allocation4], 1
    %823 = vsyncpa %s822, 1

</llo_original>
